<compile_context>
chip_gen: v7x
topology: tpu7x:2x2x1
jax: 0.10.0
libtpu: 0.0.40
codegen_flags: <defaults>
</compile_context>

<pallas_src>
import jax
import jax.numpy as jnp
from jax.experimental import pallas as pl
from jax.experimental.pallas import tpu as pltpu


def conv1x1_sum_kernel(x_ref, w_ref, o_ref):
    # x_ref: (N, C*HW) f32   w_ref: (C*HW, O) f32   o_ref: (N, O) f32
    # Single MXU pass; the spatial sum is part of the K contraction.
    o_ref[...] = jnp.dot(x_ref[...], w_ref[...],
                         preferred_element_type=jnp.float32)


def model_forward(x, w):
    """x: (N, C, H, W) float32, w: (O, C) float32 -> (N, O) float32."""
    N, C, H, W = x.shape
    O = w.shape[0]
    HW = H * W

    # Fold spatial dim into the contraction (wrapper-side layout plumbing).
    x2d = x.reshape(N, C * HW)                       # index = c*HW + p
    w_exp = jnp.repeat(w.T, HW, axis=0)              # (C*HW, O): row c*HW+p = w[:, c]

    out = pl.pallas_call(
        conv1x1_sum_kernel,
        out_shape=jax.ShapeDtypeStruct((N, O), jnp.float32),
        in_specs=[
            pl.BlockSpec(memory_space=pltpu.MemorySpace.VMEM),
            pl.BlockSpec(memory_space=pltpu.MemorySpace.VMEM),
        ],
        out_specs=pl.BlockSpec(memory_space=pltpu.MemorySpace.VMEM),
    )(x2d, w_exp)
    # torch.squeeze on (N, O) with N, O > 1 is a no-op.
    return out


if __name__ == "__main__":
    key = jax.random.PRNGKey(0)
    kx, kw = jax.random.split(key)

    # Shapes implied by the module: x (20, 4, 5, 5); Conv2d(4, 5, 1x1, bias=False)
    N, C, H, W, O = 20, 4, 5, 5, 5
    x = jax.random.normal(kx, (N, C, H, W), dtype=jnp.float32)
    # Deterministic weight init (kaiming-uniform-like range for fan_in = C*1*1)
    bound = 1.0 / (C ** 0.5)
    w = jax.random.uniform(kw, (O, C), dtype=jnp.float32, minval=-bound, maxval=bound)

    out = jax.block_until_ready(model_forward(x, w))

    # Reference check in plain JAX (1x1 conv then spatial sum)
    ref = jnp.einsum("nchw,oc->no", x, w)
    assert out.shape == (N, O)
    assert jnp.allclose(out, ref, atol=1e-4, rtol=1e-4)

    print("KERNEL_OK")
</pallas_src>

<mosaic_0001>
module attributes {stable_mosaic.version = 11 : i64} {
  func.func @conv1x1_sum_kernel(%arg0: memref<20x100xf32, #tpu.memory_space<vmem>>, %arg1: memref<100x5xf32, #tpu.memory_space<vmem>>, %arg2: memref<20x5xf32, #tpu.memory_space<vmem>>) attributes {dimension_semantics = [], scalar_prefetch = 0 : i64, scratch_operands = 0 : i64, tpu.core_type = #tpu.core_type<tc>} {
    %c0 = arith.constant 0 : index
    %c0_0 = arith.constant 0 : index
    %0 = vector.load %arg0[%c0, %c0_0] : memref<20x100xf32, #tpu.memory_space<vmem>>, vector<20x100xf32>
    %c0_1 = arith.constant 0 : index
    %c0_2 = arith.constant 0 : index
    %1 = vector.load %arg1[%c0_1, %c0_2] : memref<100x5xf32, #tpu.memory_space<vmem>>, vector<100x5xf32>
    %cst = arith.constant dense<0.000000e+00> : vector<20x5xf32>
    %2 = tpu.matmul %0, %1, %cst {dimension_numbers = #tpu.dot_dimension_numbers<[1], [0], [0], [1], [0, 0, 1, 1], [], []>} : vector<20x100xf32>, vector<100x5xf32>, vector<20x5xf32> -> vector<20x5xf32>
    %c0_3 = arith.constant 0 : index
    %c0_4 = arith.constant 0 : index
    %3 = vector.load %arg2[%c0_3, %c0_4] : memref<20x5xf32, #tpu.memory_space<vmem>>, vector<20x5xf32>
    tpu.vector_store %arg2[%c0_3, %c0_4], %2 {strides = array<i32>} : memref<20x5xf32, #tpu.memory_space<vmem>>, vector<20x5xf32>,
    return
  }
}

</mosaic_0001>

<llo_original>
// kernel: tpu_custom_call.1
$region0: #{tpu_custom_call.1}
  #allocation0 [shape = 'u32[]', space=smem, size = 0x4, offset = 0x4, fixed_abs, tag = 'smem constant byte address 0x4 - core index']
  #allocation1 [shape = 'u32[144,128]{1,0:T(1,128)}', space=vmem, size = 0x12000, scoped, tag = 'internal scratch']
  %s0 = inlined_call_operand.vmem [shape: f32[20,100], index: 0, kind: input, shape index: {}]
  %s1 = inlined_call_operand.vmem [shape: f32[100,5], index: 1, kind: input, shape index: {}]
  %s2 = inlined_call_operand.vmem [shape: f32[20,5], index: 2, kind: output, shape index: {}]
  %s3 = sld [smem:[#allocation0]]
  $region18: #{tpu_custom_call.1} parent=0
    _
  %s5 = ssub.s32 1, %s3
  %s6 = scalar_select 0, %s5, %s3
  // Predicated region
  $region2: #{tpu_custom_call.1} parent=0 // pred_check
    _
  $region3: #{tpu_custom_call.1} parent=0 // pred_check_branch
    %8 = sbr.rel (0) target = $region5
  $region4: #{tpu_custom_call.1} parent=0 // pred_region
    _
  $region5: #{tpu_custom_call.1} parent=0 // pred_fallthru
    _
  // Predicated region
  $region6: #{tpu_custom_call.1} parent=0 // pred_check
    _
  $region7: #{tpu_custom_call.1} parent=0 // pred_check_branch
    %10 = sbr.rel (0) target = $region9
  $region8: #{tpu_custom_call.1} parent=0 // pred_region
    _
  $region9: #{tpu_custom_call.1} parent=0 // pred_fallthru
    _
  %v11 = vld [vmem:[%s0] sm:$0xff]
  %v12 = vld [vmem:[%s0 + $0x8] sm:$0xff]
  %v13 = vld [vmem:[%s0 + $0x10] sm:$0xf]
  %v14 = vld [vmem:[%s1] sm:$0xff]
  %v15 = vld [vmem:[%s1 + $0x8] sm:$0xff]
  %v16 = vld [vmem:[%s1 + $0x10] sm:$0xff]
  %v17 = vld [vmem:[%s1 + $0x18] sm:$0xff]
  %v18 = vld [vmem:[%s1 + $0x20] sm:$0xff]
  %v19 = vld [vmem:[%s1 + $0x28] sm:$0xff]
  %v20 = vld [vmem:[%s1 + $0x30] sm:$0xff]
  %v21 = vld [vmem:[%s1 + $0x38] sm:$0xff]
  %v22 = vld [vmem:[%s1 + $0x40] sm:$0xff]
  %v23 = vld [vmem:[%s1 + $0x48] sm:$0xff]
  %v24 = vld [vmem:[%s1 + $0x50] sm:$0xff]
  %v25 = vld [vmem:[%s1 + $0x58] sm:$0xff]
  %v26 = vld [vmem:[%s1 + $0x60] sm:$0xf]
  %vm27 = vcmask 818176
  %v29 = vsel %vm27, %v11, 0
  %v32 = vsel %vm27, %v12, 0
  %v35 = vsel %vm27, %v13, 0
  %vm37 = vcmask 1043456
  %v39 = vsel %vm37, %v26, 0
  %41 = vmatprep.subr.mxu0 0.0
  %42 = vmatpush1.msra.mxu0 %v14
  %43 = vmatprep.subr.mxu0 0.0
  %44 = vmatpush1.msra.mxu0 %v15
  %45 = vmatprep.subr.mxu0 0.0
  %46 = vmatpush1.msra.mxu0 %v16
  %47 = vmatprep.subr.mxu0 0.0
  %48 = vmatpush1.msra.mxu0 %v17
  %49 = vmatprep.subr.mxu0 0.0
  %50 = vmatpush1.msra.mxu0 %v18
  %51 = vmatprep.subr.mxu0 0.0
  %52 = vmatpush1.msra.mxu0 %v19
  %53 = vmatprep.subr.mxu0 0.0
  %54 = vmatpush1.msra.mxu0 %v20
  %55 = vmatprep.subr.mxu0 0.0
  %56 = vmatpush1.msra.mxu0 %v21
  %57 = vmatprep.subr.mxu0 0.0
  %58 = vmatpush1.msra.mxu0 %v22
  %59 = vmatprep.subr.mxu0 0.0
  %60 = vmatpush1.msra.mxu0 %v23
  %61 = vmatprep.subr.mxu0 0.0
  %62 = vmatpush1.msra.mxu0 %v24
  %63 = vmatprep.subr.mxu0 0.0
  %64 = vmatpush1.msra.mxu0 %v25
  %65 = vmatprep.subr.mxu0 0.0
  %66 = vmatpush1.msra.mxu0 %v39
  %67 = vmatprep.subr.mxu0 0.0
  %68 = vmatpush1.msra.mxu0 0.0
  %69 = vmatprep.subr.mxu0 0.0
  %70 = vmatpush1.msra.mxu0 0.0
  %71 = vmatprep.subr.mxu0 0.0
  %72 = vmatpush1.msra.mxu0 0.0
  %73 = vmatprep.subr.mxu0 0.0
  %74 = vmatpush1.msra.mxu0 0.0
  %75 = vmatprep.subr.mxu0 0.0
  %76 = vmatpush1.msra.mxu0 0.0
  %77 = vmatprep.subr.mxu0 0.0
  %78 = vmatpush1.msra.mxu0 0.0
  %79 = vmatprep.subr.mxu0 0.0
  %80 = vmatpush1.msra.mxu0 0.0
  %81 = vmatprep.subr.mxu0 0.0
  %82 = vmatpush1.msra.mxu0 0.0
  %83 = vmatprep.subr.mxu0 0.0
  %84 = vmatpush1.msra.mxu0 0.0
  %85 = vmatprep.subr.mxu0 0.0
  %86 = vmatpush1.msra.mxu0 0.0
  %87 = vmatprep.subr.mxu0 0.0
  %88 = vmatpush1.msra.mxu0 0.0
  %89 = vmatprep.subr.mxu0 0.0
  %90 = vmatpush1.msra.mxu0 0.0
  %91 = vmatprep.subr.mxu0 0.0
  %92 = vmatpush1.msra.mxu0 0.0
  %93 = vmatprep.subr.mxu0 0.0
  %94 = vmatpush1.msra.mxu0 0.0
  %95 = vmatprep.subr.mxu0 0.0
  %96 = vmatpush1.msra.mxu0 0.0
  %97 = vmatprep.subr.mxu0 0.0
  %98 = vmatpush1.msra.mxu0 0.0
  %99 = vmatprep.subr.mxu0 0.0
  %100 = vmatpush1.msra.mxu0 0.0
  %101 = vmatprep.subr.mxu0 0.0
  %102 = vmatpush1.msra.mxu0 0.0
  %103 = vmatprep.subr.mxu0 0.0
  %104 = vmatpush1.msra.mxu0 0.0
  %105 = vmatprep.mubr.f32.mxu0 0.0
  %106 = vmatmul.mubr.f32.gmra.mrb[0].mxu0 %v29
  %v107 = vpop.f32.mrb[0].mxu0
  %v108 = vadd.f32 0.0, %v107
  %v109 = vpop.f32.mrb[0].mxu0
  %110 = vmatprep.mubr.f32.mxu0 0.0
  %111 = vmatmul.mubr.f32.gmra.mrb[0].mxu0 %v32
  %v112 = vpop.f32.mrb[0].mxu0
  %v113 = vadd.f32 0.0, %v112
  %v114 = vpop.f32.mrb[0].mxu0
  %115 = vmatprep.mubr.f32.mxu0 0.0
  %116 = vmatmul.mubr.f32.gmra.mrb[0].mxu0 %v35
  %v117 = vpop.f32.mrb[0].mxu0
  %v118 = vadd.f32 0.0, %v117
  %v119 = vpop.f32.mrb[0].mxu0
  %120 = vdwg.mxu0
  %vm121 = vcmask 39936
  %122 = vst.msk [vmem:[%s2] sm:$0xff] %vm121, %v108
  %123 = vst.msk [vmem:[%s2 + $0x8] sm:$0xff] %vm121, %v113
  %vm124 = vcmask 35840
  %125 = vst.msk [vmem:[%s2 + $0x10] sm:$0xf] %vm124, %v118
  // Predicated region
  $region10: #{tpu_custom_call.1} parent=0 // pred_check
    _
  $region11: #{tpu_custom_call.1} parent=0 // pred_check_branch
    %127 = sbr.rel (0) target = $region13
  $region12: #{tpu_custom_call.1} parent=0 // pred_region
    _
  $region13: #{tpu_custom_call.1} parent=0 // pred_fallthru
    _
  // Predicated region
  $region14: #{tpu_custom_call.1} parent=0 // pred_check
    _
  $region15: #{tpu_custom_call.1} parent=0 // pred_check_branch
    %129 = sbr.rel (0) target = $region17
  $region16: #{tpu_custom_call.1} parent=0 // pred_region
    _
  $region17: #{tpu_custom_call.1} parent=0 // pred_fallthru
    _

</llo_original>
